<compile_context>
chip_gen: v5e
topology: v5e:2x2
jax: 0.10.0
libtpu: 0.0.40
codegen_flags: <defaults>
</compile_context>

<pallas_src>
import functools

import jax
import jax.numpy as jnp
from jax import lax
from jax.experimental import pallas as pl
from jax.experimental.pallas import tpu as pltpu


def _conv_stats_kernel(w_ref, p_ref, conv_ref, sum_ref, sq_ref):
    # w_ref:    [Cout, K]       reshaped conv weight
    # p_ref:    [K, TM]         im2col patches^T tile (M on lanes)
    # conv_ref: [Cout, TM]      conv output tile (lane-dense)
    # sum_ref:  [Cout, 1]       resident per-channel sum accumulator
    # sq_ref:   [Cout, 1]       resident per-channel sum-of-squares accumulator
    @pl.when(pl.program_id(0) == 0)
    def _():
        sum_ref[...] = jnp.zeros_like(sum_ref)
        sq_ref[...] = jnp.zeros_like(sq_ref)

    conv = jnp.dot(w_ref[...], p_ref[...], preferred_element_type=jnp.float32)
    conv_ref[...] = conv
    sum_ref[...] += jnp.sum(conv, axis=1, keepdims=True)
    sq_ref[...] += jnp.sum(conv * conv, axis=1, keepdims=True)


def _bn_relu_kernel(scale_ref, shift_ref, conv_ref, o_ref):
    # Fused BatchNorm (single per-channel scale & shift) + ReLU, lane-dense.
    y = conv_ref[...] * scale_ref[...] + shift_ref[...]
    o_ref[...] = jnp.maximum(y, 0.0).astype(o_ref.dtype)


def _im2col_t_nchw(x_nchw, kh, kw, stride, padding):
    """im2col transposed: returns [K, M] with K = kh*kw*Cin (tap-major,
    Cin-minor) and M = N*OH*OW, so M sits on the lane axis."""
    n, cin, h, w = x_nchw.shape
    sh = sw = stride
    ph = pw = padding
    oh = (h + 2 * ph - kh) // sh + 1
    ow = (w + 2 * pw - kw) // sw + 1
    x_pad = jnp.pad(x_nchw, ((0, 0), (0, 0), (ph, ph), (pw, pw)))
    taps = []
    for ki in range(kh):
        for kj in range(kw):
            taps.append(x_pad[:, :, ki:ki + sh * oh:sh, kj:kj + sw * ow:sw])
    p = jnp.stack(taps, axis=0)               # [kh*kw, N, Cin, OH, OW]
    p = jnp.transpose(p, (0, 2, 1, 3, 4))     # [kh*kw, Cin, N, OH, OW]
    return p.reshape(kh * kw * cin, n * oh * ow), oh, ow


@functools.partial(jax.jit, static_argnames=("stride", "padding", "tile_m"))
def basic_conv2d_311(x_nchw, weight, bias, gamma, beta, *,
                     stride=1, padding=1, tile_m=512):
    """x_nchw: [N, Cin, H, W]; weight: [Cout, Cin, kh, kw] (PyTorch layout).
    `bias` is accepted for interface parity with nn.Conv2d but is unused:
    training-mode BatchNorm's mean subtraction cancels it exactly."""
    cout, cin, kh, kw = weight.shape
    n = x_nchw.shape[0]
    k = kh * kw * cin

    x_f32 = x_nchw.astype(jnp.float32)
    patches_t, oh, ow = _im2col_t_nchw(x_f32, kh, kw, stride, padding)
    m = n * oh * ow

    # Pad M (lane axis) up to a tile multiple.  Padded columns are zero and the
    # conv has no bias, so they contribute exactly 0 to both accumulators and
    # the batch statistics (divided by the true M) stay exact.
    m_pad = ((m + tile_m - 1) // tile_m) * tile_m
    if m_pad != m:
        patches_t = jnp.pad(patches_t, ((0, 0), (0, m_pad - m)))
    num_tiles = m_pad // tile_m

    # Weight as [Cout, K] with the same (tap-major, Cin-minor) K ordering.
    w_mat = jnp.transpose(weight.astype(jnp.float32), (0, 2, 3, 1)).reshape(cout, k)

    # Pass 1: conv tiles (lane-dense) + global per-channel sum / sumsq.
    conv_flat, ch_sum, ch_sq = pl.pallas_call(
        _conv_stats_kernel,
        out_shape=(
            jax.ShapeDtypeStruct((cout, m_pad), jnp.float32),
            jax.ShapeDtypeStruct((cout, 1), jnp.float32),
            jax.ShapeDtypeStruct((cout, 1), jnp.float32),
        ),
        grid=(num_tiles,),
        in_specs=[
            pl.BlockSpec((cout, k), lambda i: (0, 0)),
            pl.BlockSpec((k, tile_m), lambda i: (0, i)),
        ],
        out_specs=(
            pl.BlockSpec((cout, tile_m), lambda i: (0, i)),
            pl.BlockSpec((cout, 1), lambda i: (0, 0)),
            pl.BlockSpec((cout, 1), lambda i: (0, 0)),
        ),
        compiler_params=pltpu.CompilerParams(
            dimension_semantics=("arbitrary",)),
    )(w_mat, patches_t)

    # Finalize training-mode BatchNorm stats (biased variance over N*OH*OW) and
    # fold gamma/beta into one per-channel scale & shift.
    count = jnp.float32(m)
    mean = ch_sum / count
    var = jnp.maximum(ch_sq / count - mean * mean, 0.0)
    inv_std = lax.rsqrt(var + 1e-3)
    scale = gamma.astype(jnp.float32).reshape(cout, 1) * inv_std
    shift = beta.astype(jnp.float32).reshape(cout, 1) - mean * scale

    # Pass 2: normalize + ReLU; independent tiles -> "parallel" (megacore).
    out_flat = pl.pallas_call(
        _bn_relu_kernel,
        out_shape=jax.ShapeDtypeStruct((cout, m_pad), jnp.float32),
        grid=(num_tiles,),
        in_specs=[
            pl.BlockSpec((cout, 1), lambda i: (0, 0)),
            pl.BlockSpec((cout, 1), lambda i: (0, 0)),
            pl.BlockSpec((cout, tile_m), lambda i: (0, i)),
        ],
        out_specs=pl.BlockSpec((cout, tile_m), lambda i: (0, i)),
        compiler_params=pltpu.CompilerParams(
            dimension_semantics=("parallel",)),
    )(scale, shift, conv_flat)

    out = out_flat[:, :m].reshape(cout, n, oh, ow)
    return jnp.transpose(out, (1, 0, 2, 3))   # -> NCHW


def _reference(x_nchw, weight, bias, gamma, beta, stride, padding):
    """Pure-JAX reference: conv (with bias) + training-mode BN + ReLU."""
    conv = lax.conv_general_dilated(
        x_nchw.astype(jnp.float32), weight.astype(jnp.float32),
        window_strides=(stride, stride),
        padding=((padding, padding), (padding, padding)),
        dimension_numbers=("NCHW", "OIHW", "NCHW"),
    ) + bias.reshape(1, -1, 1, 1)
    mean = jnp.mean(conv, axis=(0, 2, 3), keepdims=True)
    var = jnp.mean((conv - mean) ** 2, axis=(0, 2, 3), keepdims=True)
    y = (conv - mean) * lax.rsqrt(var + 1e-3)
    y = y * gamma.reshape(1, -1, 1, 1) + beta.reshape(1, -1, 1, 1)
    return jnp.maximum(y, 0.0)


if __name__ == "__main__":
    # BasicConv2d_311(in_channels=4, out_channels=8): 3x3 conv, stride 1, pad 1.
    N, CIN, H, W = 2, 4, 16, 16
    COUT, KH, KW = 8, 3, 3
    STRIDE, PADDING = 1, 1

    key = jax.random.PRNGKey(0)
    kx, kw_, kb, kg, kbeta = jax.random.split(key, 5)

    x = jax.random.normal(kx, (N, CIN, H, W), dtype=jnp.float32)
    weight = 0.1 * jax.random.normal(kw_, (COUT, CIN, KH, KW), dtype=jnp.float32)
    bias = 0.1 * jax.random.normal(kb, (COUT,), dtype=jnp.float32)
    gamma = 1.0 + 0.1 * jax.random.normal(kg, (COUT,), dtype=jnp.float32)
    beta = 0.1 * jax.random.normal(kbeta, (COUT,), dtype=jnp.float32)

    # tile_m=128 exercises the multi-tile grid and the cross-tile BN reduction
    # (M = 2*16*16 = 512 -> 4 grid steps).  Default tile_m=512 for real sizes.
    out = basic_conv2d_311(x, weight, bias, gamma, beta,
                           stride=STRIDE, padding=PADDING, tile_m=128)
    out = jax.block_until_ready(out)

    ref = jax.block_until_ready(
        _reference(x, weight, bias, gamma, beta, STRIDE, PADDING))

    assert out.shape == (N, COUT, H, W), out.shape
    max_err = float(jnp.max(jnp.abs(out - ref)))
    assert jnp.allclose(out, ref, atol=1e-4, rtol=1e-4), max_err

    print("KERNEL_OK")
</pallas_src>

<mosaic_0001>
module attributes {stable_mosaic.version = 11 : i64} {
  func.func @_conv_stats_kernel(%arg0: i32, %arg1: memref<8x36xf32, #tpu.memory_space<vmem>>, %arg2: memref<36x128xf32, #tpu.memory_space<vmem>>, %arg3: memref<8x128xf32, #tpu.memory_space<vmem>>, %arg4: memref<8x1xf32, #tpu.memory_space<vmem>>, %arg5: memref<8x1xf32, #tpu.memory_space<vmem>>) attributes {dimension_semantics = [#tpu.dimension_semantics<arbitrary>], iteration_bounds = array<i64: 4>, scalar_prefetch = 0 : i64, scratch_operands = 0 : i64, tpu.core_type = #tpu.core_type<tc>, window_params = [{pipeline_mode = #tpu.pipeline_mode<synchronous>, transform_indices = @transform_0, window_bounds = array<i64: 8, 36>}, {transform_indices = @transform_1, window_bounds = array<i64: 36, 128>}, {transform_indices = @transform_2, window_bounds = array<i64: 8, 128>}, {pipeline_mode = #tpu.pipeline_mode<synchronous>, transform_indices = @transform_3, window_bounds = array<i64: 8, 1>}, {pipeline_mode = #tpu.pipeline_mode<synchronous>, transform_indices = @transform_4, window_bounds = array<i64: 8, 1>}]} {
    %c0_i32 = arith.constant 0 : i32
    %0 = arith.cmpi eq, %arg0, %c0_i32 : i32
    %1 = arith.extui %0 : i1 to i32
    %c0_i32_0 = arith.constant 0 : i32
    %2 = arith.cmpi ne, %1, %c0_i32_0 : i32
    scf.if %2 {
      %cst_16 = arith.constant 0.000000e+00 : f32
      %18 = vector.broadcast %cst_16 : f32 to vector<8x1xf32>
      %c0_17 = arith.constant 0 : index
      %c0_18 = arith.constant 0 : index
      %19 = vector.load %arg4[%c0_17, %c0_18] : memref<8x1xf32, #tpu.memory_space<vmem>>, vector<8x1xf32>
      tpu.vector_store %arg4[%c0_17, %c0_18], %18 {strides = array<i32>} : memref<8x1xf32, #tpu.memory_space<vmem>>, vector<8x1xf32>,
      %cst_19 = arith.constant 0.000000e+00 : f32
      %20 = vector.broadcast %cst_19 : f32 to vector<8x1xf32>
      %c0_20 = arith.constant 0 : index
      %c0_21 = arith.constant 0 : index
      %21 = vector.load %arg5[%c0_20, %c0_21] : memref<8x1xf32, #tpu.memory_space<vmem>>, vector<8x1xf32>
      tpu.vector_store %arg5[%c0_20, %c0_21], %20 {strides = array<i32>} : memref<8x1xf32, #tpu.memory_space<vmem>>, vector<8x1xf32>,
    } else {
    }
    %c0 = arith.constant 0 : index
    %c0_1 = arith.constant 0 : index
    %3 = vector.load %arg1[%c0, %c0_1] : memref<8x36xf32, #tpu.memory_space<vmem>>, vector<8x36xf32>
    %c0_2 = arith.constant 0 : index
    %c0_3 = arith.constant 0 : index
    %4 = vector.load %arg2[%c0_2, %c0_3] : memref<36x128xf32, #tpu.memory_space<vmem>>, vector<36x128xf32>
    %cst = arith.constant dense<0.000000e+00> : vector<8x128xf32>
    %5 = tpu.matmul %3, %4, %cst {dimension_numbers = #tpu.dot_dimension_numbers<[1], [0], [0], [1], [0, 0, 1, 1], [], []>} : vector<8x36xf32>, vector<36x128xf32>, vector<8x128xf32> -> vector<8x128xf32>
    %c0_4 = arith.constant 0 : index
    %c0_5 = arith.constant 0 : index
    %6 = vector.load %arg3[%c0_4, %c0_5] : memref<8x128xf32, #tpu.memory_space<vmem>>, vector<8x128xf32>
    tpu.vector_store %arg3[%c0_4, %c0_5], %5 {strides = array<i32>} : memref<8x128xf32, #tpu.memory_space<vmem>>, vector<8x128xf32>,
    %c0_6 = arith.constant 0 : index
    %c0_7 = arith.constant 0 : index
    %7 = vector.load %arg4[%c0_6, %c0_7] : memref<8x1xf32, #tpu.memory_space<vmem>>, vector<8x1xf32>
    %cst_8 = arith.constant dense<0.000000e+00> : vector<8xf32>
    %8 = vector.multi_reduction <add>, %5, %cst_8 [1] : vector<8x128xf32> to vector<8xf32>
    %9 = vector.shape_cast %8 : vector<8xf32> to vector<8x1xf32>
    %10 = arith.addf %7, %9 : vector<8x1xf32>
    %c0_9 = arith.constant 0 : index
    %c0_10 = arith.constant 0 : index
    %11 = vector.load %arg4[%c0_9, %c0_10] : memref<8x1xf32, #tpu.memory_space<vmem>>, vector<8x1xf32>
    tpu.vector_store %arg4[%c0_9, %c0_10], %10 {strides = array<i32>} : memref<8x1xf32, #tpu.memory_space<vmem>>, vector<8x1xf32>,
    %c0_11 = arith.constant 0 : index
    %c0_12 = arith.constant 0 : index
    %12 = vector.load %arg5[%c0_11, %c0_12] : memref<8x1xf32, #tpu.memory_space<vmem>>, vector<8x1xf32>
    %13 = arith.mulf %5, %5 : vector<8x128xf32>
    %cst_13 = arith.constant dense<0.000000e+00> : vector<8xf32>
    %14 = vector.multi_reduction <add>, %13, %cst_13 [1] : vector<8x128xf32> to vector<8xf32>
    %15 = vector.shape_cast %14 : vector<8xf32> to vector<8x1xf32>
    %16 = arith.addf %12, %15 : vector<8x1xf32>
    %c0_14 = arith.constant 0 : index
    %c0_15 = arith.constant 0 : index
    %17 = vector.load %arg5[%c0_14, %c0_15] : memref<8x1xf32, #tpu.memory_space<vmem>>, vector<8x1xf32>
    tpu.vector_store %arg5[%c0_14, %c0_15], %16 {strides = array<i32>} : memref<8x1xf32, #tpu.memory_space<vmem>>, vector<8x1xf32>,
    return
  }
  func.func @transform_0(%arg0: i32) -> (i32, i32) {
    %c0_i32 = arith.constant 0 : i32
    %c0_i32_0 = arith.constant 0 : i32
    %c0_i32_1 = arith.constant 0 : i32
    return %c0_i32, %c0_i32_0 : i32, i32
  }
  func.func @transform_1(%arg0: i32) -> (i32, i32) {
    %c0_i32 = arith.constant 0 : i32
    %c0_i32_0 = arith.constant 0 : i32
    return %c0_i32, %arg0 : i32, i32
  }
  func.func @transform_2(%arg0: i32) -> (i32, i32) {
    %c0_i32 = arith.constant 0 : i32
    %c0_i32_0 = arith.constant 0 : i32
    return %c0_i32, %arg0 : i32, i32
  }
  func.func @transform_3(%arg0: i32) -> (i32, i32) {
    %c0_i32 = arith.constant 0 : i32
    %c0_i32_0 = arith.constant 0 : i32
    %c0_i32_1 = arith.constant 0 : i32
    return %c0_i32, %c0_i32_0 : i32, i32
  }
  func.func @transform_4(%arg0: i32) -> (i32, i32) {
    %c0_i32 = arith.constant 0 : i32
    %c0_i32_0 = arith.constant 0 : i32
    %c0_i32_1 = arith.constant 0 : i32
    return %c0_i32, %c0_i32_0 : i32, i32
  }
}

module attributes {stable_mosaic.version = 11 : i64} {
  func.func @_bn_relu_kernel(%arg0: i32, %arg1: memref<8x1xf32, #tpu.memory_space<vmem>>, %arg2: memref<8x1xf32, #tpu.memory_space<vmem>>, %arg3: memref<8x128xf32, #tpu.memory_space<vmem>>, %arg4: memref<8x128xf32, #tpu.memory_space<vmem>>) attributes {dimension_semantics = [#tpu.dimension_semantics<parallel>], iteration_bounds = array<i64: 4>, scalar_prefetch = 0 : i64, scratch_operands = 0 : i64, tpu.core_type = #tpu.core_type<tc>, window_params = [{pipeline_mode = #tpu.pipeline_mode<synchronous>, transform_indices = @transform_0, window_bounds = array<i64: 8, 1>}, {pipeline_mode = #tpu.pipeline_mode<synchronous>, transform_indices = @transform_1, window_bounds = array<i64: 8, 1>}, {transform_indices = @transform_2, window_bounds = array<i64: 8, 128>}, {transform_indices = @transform_3, window_bounds = array<i64: 8, 128>}]} {
    %c0 = arith.constant 0 : index
    %c0_0 = arith.constant 0 : index
    %0 = vector.load %arg3[%c0, %c0_0] : memref<8x128xf32, #tpu.memory_space<vmem>>, vector<8x128xf32>
    %c0_1 = arith.constant 0 : index
    %c0_2 = arith.constant 0 : index
    %1 = vector.load %arg1[%c0_1, %c0_2] : memref<8x1xf32, #tpu.memory_space<vmem>>, vector<8x1xf32>
    %2 = vector.broadcast %1 : vector<8x1xf32> to vector<8x128xf32>
    %3 = arith.mulf %0, %2 : vector<8x128xf32>
    %c0_3 = arith.constant 0 : index
    %c0_4 = arith.constant 0 : index
    %4 = vector.load %arg2[%c0_3, %c0_4] : memref<8x1xf32, #tpu.memory_space<vmem>>, vector<8x1xf32>
    %5 = vector.broadcast %4 : vector<8x1xf32> to vector<8x128xf32>
    %6 = arith.addf %3, %5 : vector<8x128xf32>
    %cst = arith.constant 0.000000e+00 : f32
    %7 = vector.broadcast %cst : f32 to vector<8x128xf32>
    %8 = arith.maximumf %6, %7 : vector<8x128xf32>
    %c0_5 = arith.constant 0 : index
    %c0_6 = arith.constant 0 : index
    %9 = vector.load %arg4[%c0_5, %c0_6] : memref<8x128xf32, #tpu.memory_space<vmem>>, vector<8x128xf32>
    tpu.vector_store %arg4[%c0_5, %c0_6], %8 {strides = array<i32>} : memref<8x128xf32, #tpu.memory_space<vmem>>, vector<8x128xf32>,
    return
  }
  func.func @transform_0(%arg0: i32) -> (i32, i32) {
    %c0_i32 = arith.constant 0 : i32
    %c0_i32_0 = arith.constant 0 : i32
    %c0_i32_1 = arith.constant 0 : i32
    return %c0_i32, %c0_i32_0 : i32, i32
  }
  func.func @transform_1(%arg0: i32) -> (i32, i32) {
    %c0_i32 = arith.constant 0 : i32
    %c0_i32_0 = arith.constant 0 : i32
    %c0_i32_1 = arith.constant 0 : i32
    return %c0_i32, %c0_i32_0 : i32, i32
  }
  func.func @transform_2(%arg0: i32) -> (i32, i32) {
    %c0_i32 = arith.constant 0 : i32
    %c0_i32_0 = arith.constant 0 : i32
    return %c0_i32, %arg0 : i32, i32
  }
  func.func @transform_3(%arg0: i32) -> (i32, i32) {
    %c0_i32 = arith.constant 0 : i32
    %c0_i32_0 = arith.constant 0 : i32
    return %c0_i32, %arg0 : i32, i32
  }
}

</mosaic_0001>

<llo_original>
// kernel: basic_conv2d_311.2
$region0: #{basic_conv2d_311.2}
  #allocation0 [shape = 'u32[]', space=smem, size = 0x4, offset = 0x4, fixed_abs, tag = 'smem constant byte address 0x4 - core index']
  #allocation1 [shape = 'u32[72,128]{1,0:T(1,128)}', space=vmem, size = 0x9000, scoped, tag = 'internal scratch']
  %s0 = inlined_call_operand.vmem [shape: f32[8,36], index: 0, kind: input, shape index: {}]
  %s1 = inlined_call_operand.vmem [shape: f32[36,512], index: 1, kind: input, shape index: {}]
  %s2 = inlined_call_operand.vmem [shape: f32[8,512], index: 2, kind: output, shape index: {0}]
  %s3 = inlined_call_operand.vmem [shape: f32[8,1], index: 3, kind: output, shape index: {1}]
  %s4 = inlined_call_operand.vmem [shape: f32[8,1], index: 4, kind: output, shape index: {2}]
  %5 = xla_tuple %s2, %s3, %s4
  %s6 = sld [smem:[#allocation0]]
  $region99: #{basic_conv2d_311.2} parent=0
    _
  %s8 = ssub.s32 1, %s6
  %s9 = scalar_select 0, %s8, %s6
  $region1: #{basic_conv2d_311.2} parent=0
    #allocation2 [shape = 'u8[40960]{0}', space=vmem, size = 0xa000, scoped, tag = 'input window, operand 1']
    loop: start=0, step=1, limit=6
    $region2: #{basic_conv2d_311.2} parent=1 // loop_pre_header
      _
    $region3: #{basic_conv2d_311.2} parent=1 // loop_header
      %s11 = sphi 0, %s15
      %p12 = scmp.ge.s32.totalorder %s11, 6
      %s19 = sphi 0, %s19
      %s21 = sphi 0, %s19
      %s22 = sphi 0, %s21
      %s36 = sphi 0, %s22
      %s42 = sphi 0, %s44
      %s45 = sphi 0, %s42
      %s46 = sphi 0, %s45
      %s62 = sphi 0, %s46
      %s68 = sphi 0, %s70
      %s71 = sphi 0, %s68
      %s72 = sphi 0, %s71
      %s88 = sphi 0, %s72
      %s92 = sphi 0, %s92
      %s94 = sphi 0, %s92
      %s95 = sphi 0, %s94
      %s109 = sphi 0, %s95
      %s113 = sphi 0, %s113
      %s115 = sphi 0, %s113
      %s116 = sphi 0, %s115
      %s130 = sphi 0, %s116
    $region4: #{basic_conv2d_311.2} parent=1 // loop_header_branch
      %14 = sbr.rel (%p12) target = $region8
    $region5: #{basic_conv2d_311.2} parent=1 // loop_body
      %s16 = ssub.s32 %s11, 1
      %s17 = ssub.s32 %s11, 2
      %s18 = sadd.s32 %s11, 1
      %s20 = sadd.s32 %s19, 1
      %p23 = scmp.eq.s32.totalorder %s11, 3
      %p24 = scmp.ne.s32.totalorder %s19, %s21
      %p25 = scmp.eq.s32.totalorder %s11, 0
      %p26 = por %p24, %p25
      %p27 = scmp.ne.s32.totalorder %s19, %s21
      %p28 = scmp.eq.s32.totalorder %s16, 3
      %p29 = por %p27, %p28
      %p30 = scmp.ne.s32.totalorder %s21, %s22
      %p31 = scmp.eq.s32.totalorder %s16, 0
      %p32 = por %p30, %p31
      %p33 = scmp.ne.s32.totalorder %s21, %s22
      %p34 = scmp.eq.s32.totalorder %s17, 3
      %p35 = por %p33, %p34
      %p37 = scmp.ne.s32.totalorder %s22, %s36
      %p38 = scmp.eq.s32.totalorder %s17, 0
      %p39 = por %p37, %p38
      %s40 = ssub.s32 %s11, %s18
      %p41 = scmp.eq.s32.totalorder %s40, 0
      %s43 = sadd.s32 %s42, 1
      %s44 = scalar_select %p41, %s42, %s43
      %p47 = pneg %p41
      %p48 = scmp.eq.s32.totalorder %s11, 3
      %p49 = por %p47, %p48
      %p50 = scmp.ne.s32.totalorder %s42, %s45
      %p51 = scmp.eq.s32.totalorder %s11, 0
      %p52 = por %p50, %p51
      %p53 = scmp.ne.s32.totalorder %s42, %s45
      %p54 = scmp.eq.s32.totalorder %s16, 3
      %p55 = por %p53, %p54
      %p56 = scmp.ne.s32.totalorder %s45, %s46
      %p57 = scmp.eq.s32.totalorder %s16, 0
      %p58 = por %p56, %p57
      %p59 = scmp.ne.s32.totalorder %s45, %s46
      %p60 = scmp.eq.s32.totalorder %s17, 3
      %p61 = por %p59, %p60
      %p63 = scmp.ne.s32.totalorder %s46, %s62
      %p64 = scmp.eq.s32.totalorder %s17, 0
      %p65 = por %p63, %p64
      %s66 = ssub.s32 %s11, %s18
      %p67 = scmp.eq.s32.totalorder %s66, 0
      %s69 = sadd.s32 %s68, 1
      %s70 = scalar_select %p67, %s68, %s69
      %p73 = pneg %p67
      %p74 = scmp.eq.s32.totalorder %s11, 3
      %p75 = por %p73, %p74
      %p76 = scmp.ne.s32.totalorder %s68, %s71
      %p77 = scmp.eq.s32.totalorder %s11, 0
      %p78 = por %p76, %p77
      %p79 = scmp.ne.s32.totalorder %s68, %s71
      %p80 = scmp.eq.s32.totalorder %s16, 3
      %p81 = por %p79, %p80
      %p82 = scmp.ne.s32.totalorder %s71, %s72
      %p83 = scmp.eq.s32.totalorder %s16, 0
      %p84 = por %p82, %p83
      %p85 = scmp.ne.s32.totalorder %s71, %s72
      %p86 = scmp.eq.s32.totalorder %s17, 3
      %p87 = por %p85, %p86
      %p89 = scmp.ne.s32.totalorder %s72, %s88
      %p90 = scmp.eq.s32.totalorder %s17, 0
      %p91 = por %p89, %p90
      %s93 = sadd.s32 %s92, 1
      %p96 = scmp.eq.s32.totalorder %s11, 3
      %p97 = scmp.ne.s32.totalorder %s92, %s94
      %p98 = scmp.eq.s32.totalorder %s11, 0
      %p99 = por %p97, %p98
      %p100 = scmp.ne.s32.totalorder %s92, %s94
      %p101 = scmp.eq.s32.totalorder %s16, 3
      %p102 = por %p100, %p101
      %p103 = scmp.ne.s32.totalorder %s94, %s95
      %p104 = scmp.eq.s32.totalorder %s16, 0
      %p105 = por %p103, %p104
      %p106 = scmp.ne.s32.totalorder %s94, %s95
      %p107 = scmp.eq.s32.totalorder %s17, 3
      %p108 = por %p106, %p107
      %p110 = scmp.ne.s32.totalorder %s95, %s109
      %p111 = scmp.eq.s32.totalorder %s17, 0
      %p112 = por %p110, %p111
      %s114 = sadd.s32 %s113, 1
      %p117 = scmp.eq.s32.totalorder %s11, 3
      %p118 = scmp.ne.s32.totalorder %s113, %s115
      %p119 = scmp.eq.s32.totalorder %s11, 0
      %p120 = por %p118, %p119
      %p121 = scmp.ne.s32.totalorder %s113, %s115
      %p122 = scmp.eq.s32.totalorder %s16, 3
      %p123 = por %p121, %p122
      %p124 = scmp.ne.s32.totalorder %s115, %s116
      %p125 = scmp.eq.s32.totalorder %s16, 0
      %p126 = por %p124, %p125
      %p127 = scmp.ne.s32.totalorder %s115, %s116
      %p128 = scmp.eq.s32.totalorder %s17, 3
      %p129 = por %p127, %p128
      %p131 = scmp.ne.s32.totalorder %s116, %s130
      %p132 = scmp.eq.s32.totalorder %s17, 0
      %p133 = por %p131, %p132
      %p134 = scmp.le.s32.totalorder 1, %s11
      %p135 = scmp.lt.s32.totalorder %s11, 5
      %p136 = pnand %p134, %p135
      %p137 = pneg %p136
      // Predicated region
      $region9: #{basic_conv2d_311.2} parent=5 // pred_check
        _
      $region10: #{basic_conv2d_311.2} parent=5 // pred_check_branch
        %139 = sbr.rel (%p136) target = $region12
      $region11: #{basic_conv2d_311.2} parent=5 // pred_region
        %s140 = ssub.s32 %s11, 1
        // Predicated region
        $region13: #{basic_conv2d_311.2} parent=11 // pred_check
          %p141 = pneg %p32
        $region14: #{basic_conv2d_311.2} parent=11 // pred_check_branch
          %143 = sbr.rel (%p141) target = $region16
        $region15: #{basic_conv2d_311.2} parent=11 // pred_region
          _
        $region16: #{basic_conv2d_311.2} parent=11 // pred_fallthru
          _
      $region12: #{basic_conv2d_311.2} parent=5 // pred_fallthru
        _
      %p144 = scmp.lt.s32.totalorder %s11, 4
      // Predicated region
      $region17: #{basic_conv2d_311.2} parent=5 // pred_check
        %p145 = pneg %p144
      $region18: #{basic_conv2d_311.2} parent=5 // pred_check_branch
        %147 = sbr.rel (%p145) target = $region20
      $region19: #{basic_conv2d_311.2} parent=5 // pred_region
        // Predicated region
        $region21: #{basic_conv2d_311.2} parent=19 // pred_check
          %p148 = pneg %p52
        $region22: #{basic_conv2d_311.2} parent=19 // pred_check_branch
          %150 = sbr.rel (%p148) target = $region24
        $region23: #{basic_conv2d_311.2} parent=19 // pred_region
          %s151 = sand.u32 %s42, 1
          %s152 = sand.u32 %s42, 1
          %s153 = smul.addr %s152, 40
          %s154 = scalar_lea.vmem [#allocation2], %s153
          %s155 = smul.addr %s11, 8
          %s156 = scalar_lea.vmem %s1, %s155
          // Predicated region
          $region25: #{basic_conv2d_311.2} parent=23 // pred_check
            _
          $region26: #{basic_conv2d_311.2} parent=23 // pred_check_branch
            %158 = sbr.rel (0) target = $region28
          $region27: #{basic_conv2d_311.2} parent=23 // pred_region
            // Predicated region
            $region29: #{basic_conv2d_311.2} parent=27 // pred_check
              _
            $region30: #{basic_conv2d_311.2} parent=27 // pred_check_branch
              %160 = sbr.rel (0) target = $region32
            $region31: #{basic_conv2d_311.2} parent=27 // pred_region
              // Predicated region
              $region44: #{basic_conv2d_311.2} parent=31 // pred_check
                _
              $region45: #{basic_conv2d_311.2} parent=31 // pred_check_branch
                %184 = sbr.rel (0) target = $region47
              $region46: #{basic_conv2d_311.2} parent=31 // pred_region
                loop: start=0, step=1, limit=1
                $region48: #{basic_conv2d_311.2} parent=46 // loop_pre_header
                  _
                $region49: #{basic_conv2d_311.2} parent=46 // loop_header
                  %s186 = sphi 0, %s190
                  %p187 = scmp.ge.s32.totalorder %s186, 1
                  %s191 = sphi %s156, %s156
                  %s192 = sphi %s154, %s154
                $region50: #{basic_conv2d_311.2} parent=46 // loop_header_branch
                  %189 = sbr.rel (%p187) target = $region54
                $region51: #{basic_conv2d_311.2} parent=46 // loop_body
                  %v193 = vld [vmem:[%s191] sm:$0xff]
                  %194 = vst [vmem:[%s192] sm:$0xff] %v193
                  %v195 = vld [vmem:[%s191 + $0x20] sm:$0xff]
                  %196 = vst [vmem:[%s192 + $0x8] sm:$0xff] %v195
                  %v197 = vld [vmem:[%s191 + $0x40] sm:$0xff]
                  %198 = vst [vmem:[%s192 + $0x10] sm:$0xff] %v197
                  %v199 = vld [vmem:[%s191 + $0x60] sm:$0xff]
                  %200 = vst [vmem:[%s192 + $0x18] sm:$0xff] %v199
                  %v201 = vld [vmem:[%s191 + $0x80] sm:$0xff]
                  %202 = vst [vmem:[%s192 + $0x20] sm:$0xff] %v201
                $region52: #{basic_conv2d_311.2} parent=46 // loop_footer
                  %s190 = sadd.s32 1, %s186
                $region53: #{basic_conv2d_311.2} parent=46 // loop_footer_branch
                  %185 = sbr.rel target = $region49
                $region54: #{basic_conv2d_311.2} parent=46 // loop_exit
                  _
              $region47: #{basic_conv2d_311.2} parent=31 // pred_fallthru
                _
              // Predicated region
              $region55: #{basic_conv2d_311.2} parent=31 // pred_check
                _
              $region56: #{basic_conv2d_311.2} parent=31 // pred_check_branch
                %204 = sbr.rel target = $region58
              $region57: #{basic_conv2d_311.2} parent=31 // pred_region
                _
              $region58: #{basic_conv2d_311.2} parent=31 // pred_fallthru
                _
            $region32: #{basic_conv2d_311.2} parent=27 // pred_fallthru
              _
            // Predicated region
            $region33: #{basic_conv2d_311.2} parent=27 // pred_check
              _
            $region34: #{basic_conv2d_311.2} parent=27 // pred_check_branch
              %162 = sbr.rel target = $region36
            $region35: #{basic_conv2d_311.2} parent=27 // pred_region
              %s164 = ssub.s32 256, 1
              loop: start=0, step=1, limit=1
              $region37: #{basic_conv2d_311.2} parent=35 // loop_pre_header
                _
              $region38: #{basic_conv2d_311.2} parent=35 // loop_header
                %s166 = sphi 0, %s170
                %p167 = scmp.ge.s32.totalorder %s166, 1
                %s171 = sphi %s156, %s156
                %s172 = sphi %s154, %s154
              $region39: #{basic_conv2d_311.2} parent=35 // loop_header_branch
                %169 = sbr.rel (%p167) target = $region43
              $region40: #{basic_conv2d_311.2} parent=35 // loop_body
                %v173 = vld [vmem:[%s171] sm:%s164]
                %174 = vst [vmem:[%s172] sm:%s164] %v173
                %v175 = vld [vmem:[%s171 + $0x20] sm:%s164]
                %176 = vst [vmem:[%s172 + $0x8] sm:%s164] %v175
                %v177 = vld [vmem:[%s171 + $0x40] sm:%s164]
                %178 = vst [vmem:[%s172 + $0x10] sm:%s164] %v177
                %v179 = vld [vmem:[%s171 + $0x60] sm:%s164]
                %180 = vst [vmem:[%s172 + $0x18] sm:%s164] %v179
                %v181 = vld [vmem:[%s171 + $0x80] sm:%s164]
                %182 = vst [vmem:[%s172 + $0x20] sm:%s164] %v181
              $region41: #{basic_conv2d_311.2} parent=35 // loop_footer
                %s170 = sadd.s32 1, %s166
              $region42: #{basic_conv2d_311.2} parent=35 // loop_footer_branch
                %165 = sbr.rel target = $region38
              $region43: #{basic_conv2d_311.2} parent=35 // loop_exit
                _
            $region36: #{basic_conv2d_311.2} parent=27 // pred_fallthru
              _
          $region28: #{basic_conv2d_311.2} parent=23 // pred_fallthru
            _
          %205 = vnop
        $region24: #{basic_conv2d_311.2} parent=19 // pred_fallthru
          _
      $region20: #{basic_conv2d_311.2} parent=5 // pred_fallthru
        _
      %p206 = scmp.le.s32.totalorder 1, %s11
      %p207 = scmp.lt.s32.totalorder %s11, 5
      %p208 = pnand %p206, %p207
      %p209 = pneg %p208
      // Predicated region
      $region59: #{basic_conv2d_311.2} parent=5 // pred_check
        _
      $region60: #{basic_conv2d_311.2} parent=5 // pred_check_branch
        %211 = sbr.rel (%p208) target = $region62
      $region61: #{basic_conv2d_311.2} parent=5 // pred_region
        %s212 = ssub.s32 %s11, 1
        %s213 = sand.u32 %s45, 1
        %s214 = sand.u32 %s45, 1
        %s215 = smul.addr %s214, 40
        %s216 = scalar_lea.vmem [#allocation2], %s215
        // Predicated region
        $region63: #{basic_conv2d_311.2} parent=61 // pred_check
          %p217 = pneg %p58
        $region64: #{basic_conv2d_311.2} parent=61 // pred_check_branch
          %219 = sbr.rel (%p217) target = $region66
        $region65: #{basic_conv2d_311.2} parent=61 // pred_region
          _
        $region66: #{basic_conv2d_311.2} parent=61 // pred_fallthru
          _
        %p220 = pneg %p32
        %p221 = pneg %p29
        %s222 = sand.u32 %s45, 1
        %s223 = sand.u32 %s45, 1
        %s224 = smul.addr %s223, 40
        %s225 = scalar_lea.vmem [#allocation2], %s224
        %p226 = pneg %p58
        %p227 = pneg %p55
        %p228 = pneg %p84
        %p229 = pneg %p81
        %p230 = scmp.lt.s32.totalorder %s16, 3
        %s231 = scalar_select %p230, %s16, 3
        %s232 = smul.addr %s231, 8
        %s233 = scalar_lea.vmem %s2, %s232
        %p234 = pneg %p105
        %p235 = pneg %p102
        %p236 = pneg %p126
        %p237 = pneg %p123
        %p238 = scmp.lt.s32.totalorder %s16, 3
        %s239 = scalar_select %p238, %s16, 3
        %s240 = smul.addr %s239, 8
        %s241 = scalar_lea.vmem %s2, %s240
        %p242 = scmp.eq.s32.totalorder %s16, 0
        // Predicated region
        $region67: #{basic_conv2d_311.2} parent=61 // pred_check
          %p243 = pneg %p242
        $region68: #{basic_conv2d_311.2} parent=61 // pred_check_branch
          %245 = sbr.rel (%p243) target = $region70
        $region69: #{basic_conv2d_311.2} parent=61 // pred_region
          %vm246 = vcmask 7168
          %247 = vst.msk [vmem:[%s3] sm:$0xff] %vm246, 0.0
          %248 = vst.msk [vmem:[%s4] sm:$0xff] %vm246, 0.0
        $region70: #{basic_conv2d_311.2} parent=61 // pred_fallthru
          _
        %v249 = vld [vmem:[%s0] sm:$0xff]
        %v250 = vld [vmem:[%s216] sm:$0xff]
        %v251 = vld [vmem:[%s216 + $0x8] sm:$0xff]
        %v252 = vld [vmem:[%s216 + $0x10] sm:$0xff]
        %v253 = vld [vmem:[%s216 + $0x18] sm:$0xff]
        %v254 = vld [vmem:[%s216 + $0x20] sm:$0xf]
        %vm255 = vcmask 293888
        %v257 = vsel %vm255, %v249, 0
        %vm259 = vcmask 1043456
        %v261 = vsel %vm259, %v254, 0
        %263 = vmatpush.msra.mxu0 0.0
        %264 = vmatpush.msra.mxu0 0.0
        %265 = vmatpush.msra.mxu0 0.0
        %266 = vmatpush.msra.mxu0 0.0
        %267 = vmatpush.msra.mxu0 0.0
        %268 = vmatpush.msra.mxu0 0.0
        %269 = vmatpush.msra.mxu0 0.0
        %270 = vmatpush.msra.mxu0 0.0
        %271 = vmatpush.msra.mxu0 0.0
        %272 = vmatpush.msra.mxu0 0.0
        %273 = vmatpush.msra.mxu0 0.0
        %274 = vmatpush.msra.mxu0 %v261
        %275 = vmatpush.msra.mxu0 %v253
        %276 = vmatpush.msra.mxu0 %v252
        %277 = vmatpush.msra.mxu0 %v251
        %278 = vmatpush.msra.mxu0 %v250
        %279 = vmatmul.f32.gmra.mxu0 %v257
        %v280 = vpop.f32.mrf.mxu0
        %v281 = vadd.f32 0.0, %v280
        %282 = vdwg.mxu0
        %283 = vst [vmem:[%s241] sm:$0xff] %v281
        %v284 = vld [vmem:[%s3] sm:$0xff]
        %285 = vadd.xlane.f32.xlu0 %v281
        %v286 = vpop.xlane.xlu0 %285
        %v287 = vadd.f32 %v284, %v286
        %vm288 = vcmask 7168
        %289 = vst.msk [vmem:[%s3] sm:$0xff] %vm288, %v287
        %v290 = vld [vmem:[%s4] sm:$0xff]
        %v291 = vmul.f32 %v281, %v281
        %292 = vadd.xlane.f32.xlu0 %v291
        %v293 = vpop.xlane.xlu0 %292
        %v294 = vadd.f32 %v290, %v293
        %295 = vst.msk [vmem:[%s4] sm:$0xff] %vm288, %v294
        %p296 = scmp.lt.s32.totalorder %s16, 3
        %s297 = scalar_select %p296, %s16, 3
        %s298 = smul.addr %s297, 8
        %s299 = scalar_lea.vmem %s2, %s298
        // Predicated region
        $region71: #{basic_conv2d_311.2} parent=61 // pred_check
          %p300 = pneg %p81
        $region72: #{basic_conv2d_311.2} parent=61 // pred_check_branch
          %302 = sbr.rel (%p300) target = $region74
        $region73: #{basic_conv2d_311.2} parent=61 // pred_region
          _
        $region74: #{basic_conv2d_311.2} parent=61 // pred_fallthru
          _
        // Predicated region
        $region75: #{basic_conv2d_311.2} parent=61 // pred_check
          %p303 = pneg %p102
        $region76: #{basic_conv2d_311.2} parent=61 // pred_check_branch
          %305 = sbr.rel (%p303) target = $region78
        $region77: #{basic_conv2d_311.2} parent=61 // pred_region
          _
        $region78: #{basic_conv2d_311.2} parent=61 // pred_fallthru
          _
        // Predicated region
        $region79: #{basic_conv2d_311.2} parent=61 // pred_check
          %p306 = pneg %p123
        $region80: #{basic_conv2d_311.2} parent=61 // pred_check_branch
          %308 = sbr.rel (%p306) target = $region82
        $region81: #{basic_conv2d_311.2} parent=61 // pred_region
          _
        $region82: #{basic_conv2d_311.2} parent=61 // pred_fallthru
          _
        // Predicated region
        $region83: #{basic_conv2d_311.2} parent=61 // pred_check
          %p309 = pneg %p102
        $region84: #{basic_conv2d_311.2} parent=61 // pred_check_branch
          %311 = sbr.rel (%p309) target = $region86
        $region85: #{basic_conv2d_311.2} parent=61 // pred_region
          _
        $region86: #{basic_conv2d_311.2} parent=61 // pred_fallthru
          _
        // Predicated region
        $region87: #{basic_conv2d_311.2} parent=61 // pred_check
          %p312 = pneg %p123
        $region88: #{basic_conv2d_311.2} parent=61 // pred_check_branch
          %314 = sbr.rel (%p312) target = $region90
        $region89: #{basic_conv2d_311.2} parent=61 // pred_region
          _
        $region90: #{basic_conv2d_311.2} parent=61 // pred_fallthru
          _
      $region62: #{basic_conv2d_311.2} parent=5 // pred_fallthru
        _
      %p315 = scmp.le.s32.totalorder 2, %s11
      // Predicated region
      $region91: #{basic_conv2d_311.2} parent=5 // pred_check
        %p316 = pneg %p315
      $region92: #{basic_conv2d_311.2} parent=5 // pred_check_branch
        %318 = sbr.rel (%p316) target = $region94
      $region93: #{basic_conv2d_311.2} parent=5 // pred_region
        %s319 = ssub.s32 %s11, 2
        // Predicated region
        $region95: #{basic_conv2d_311.2} parent=93 // pred_check
          %p320 = pneg %p87
        $region96: #{basic_conv2d_311.2} parent=93 // pred_check_branch
          %322 = sbr.rel (%p320) target = $region98
        $region97: #{basic_conv2d_311.2} parent=93 // pred_region
          %p323 = scmp.lt.s32.totalorder %s17, 3
          %s324 = scalar_select %p323, %s17, 3
          %s325 = smul.addr %s324, 8
          %s326 = scalar_lea.vmem %s2, %s325
        $region98: #{basic_conv2d_311.2} parent=93 // pred_fallthru
          _
      $region94: #{basic_conv2d_311.2} parent=5 // pred_fallthru
        _
    $region6: #{basic_conv2d_311.2} parent=1 // loop_footer
      %s15 = sadd.s32 1, %s11
    $region7: #{basic_conv2d_311.2} parent=1 // loop_footer_branch
      %10 = sbr.rel target = $region3
    $region8: #{basic_conv2d_311.2} parent=1 // loop_exit
      _

// kernel: basic_conv2d_311.3
$region0: #{basic_conv2d_311.3}
  #allocation0 [shape = 'u32[]', space=smem, size = 0x4, offset = 0x4, fixed_abs, tag = 'smem constant byte address 0x4 - core index']
  #allocation1 [shape = 'u32[72,128]{1,0:T(1,128)}', space=vmem, size = 0x9000, scoped, tag = 'internal scratch']
  %s0 = inlined_call_operand.vmem [shape: f32[8,1], index: 0, kind: input, shape index: {}]
  %s1 = inlined_call_operand.vmem [shape: f32[8,1], index: 1, kind: input, shape index: {}]
  %s2 = inlined_call_operand.vmem [shape: f32[8,512], index: 2, kind: input, shape index: {}]
  %s3 = inlined_call_operand.vmem [shape: f32[8,512], index: 3, kind: output, shape index: {}]
  %s4 = sld [smem:[#allocation0]]
  $region45: #{basic_conv2d_311.3} parent=0
    _
  %s6 = ssub.s32 1, %s4
  %s7 = scalar_select 0, %s6, %s4
  loop: start=0, step=1, limit=6
  $region2: #{basic_conv2d_311.3} parent=0 // loop_pre_header
    _
  $region3: #{basic_conv2d_311.3} parent=0 // loop_header
    %s9 = sphi 0, %s13
    %p10 = scmp.ge.s32.totalorder %s9, 6
    %s17 = sphi 0, %s17
    %s19 = sphi 0, %s17
    %s20 = sphi 0, %s19
    %s34 = sphi 0, %s20
    %s38 = sphi 0, %s38
    %s40 = sphi 0, %s38
    %s41 = sphi 0, %s40
    %s55 = sphi 0, %s41
    %s61 = sphi 0, %s63
    %s64 = sphi 0, %s61
    %s65 = sphi 0, %s64
    %s81 = sphi 0, %s65
    %s87 = sphi 0, %s89
    %s90 = sphi 0, %s87
    %s91 = sphi 0, %s90
    %s107 = sphi 0, %s91
  $region4: #{basic_conv2d_311.3} parent=0 // loop_header_branch
    %12 = sbr.rel (%p10) target = $region8
  $region5: #{basic_conv2d_311.3} parent=0 // loop_body
    %s14 = ssub.s32 %s9, 1
    %s15 = ssub.s32 %s9, 2
    %s16 = sadd.s32 %s9, 1
    %s18 = sadd.s32 %s17, 1
    %p21 = scmp.eq.s32.totalorder %s9, 3
    %p22 = scmp.ne.s32.totalorder %s17, %s19
    %p23 = scmp.eq.s32.totalorder %s9, 0
    %p24 = por %p22, %p23
    %p25 = scmp.ne.s32.totalorder %s17, %s19
    %p26 = scmp.eq.s32.totalorder %s14, 3
    %p27 = por %p25, %p26
    %p28 = scmp.ne.s32.totalorder %s19, %s20
    %p29 = scmp.eq.s32.totalorder %s14, 0
    %p30 = por %p28, %p29
    %p31 = scmp.ne.s32.totalorder %s19, %s20
    %p32 = scmp.eq.s32.totalorder %s15, 3
    %p33 = por %p31, %p32
    %p35 = scmp.ne.s32.totalorder %s20, %s34
    %p36 = scmp.eq.s32.totalorder %s15, 0
    %p37 = por %p35, %p36
    %s39 = sadd.s32 %s38, 1
    %p42 = scmp.eq.s32.totalorder %s9, 3
    %p43 = scmp.ne.s32.totalorder %s38, %s40
    %p44 = scmp.eq.s32.totalorder %s9, 0
    %p45 = por %p43, %p44
    %p46 = scmp.ne.s32.totalorder %s38, %s40
    %p47 = scmp.eq.s32.totalorder %s14, 3
    %p48 = por %p46, %p47
    %p49 = scmp.ne.s32.totalorder %s40, %s41
    %p50 = scmp.eq.s32.totalorder %s14, 0
    %p51 = por %p49, %p50
    %p52 = scmp.ne.s32.totalorder %s40, %s41
    %p53 = scmp.eq.s32.totalorder %s15, 3
    %p54 = por %p52, %p53
    %p56 = scmp.ne.s32.totalorder %s41, %s55
    %p57 = scmp.eq.s32.totalorder %s15, 0
    %p58 = por %p56, %p57
    %s59 = ssub.s32 %s9, %s16
    %p60 = scmp.eq.s32.totalorder %s59, 0
    %s62 = sadd.s32 %s61, 1
    %s63 = scalar_select %p60, %s61, %s62
    %p66 = pneg %p60
    %p67 = scmp.eq.s32.totalorder %s9, 3
    %p68 = por %p66, %p67
    %p69 = scmp.ne.s32.totalorder %s61, %s64
    %p70 = scmp.eq.s32.totalorder %s9, 0
    %p71 = por %p69, %p70
    %p72 = scmp.ne.s32.totalorder %s61, %s64
    %p73 = scmp.eq.s32.totalorder %s14, 3
    %p74 = por %p72, %p73
    %p75 = scmp.ne.s32.totalorder %s64, %s65
    %p76 = scmp.eq.s32.totalorder %s14, 0
    %p77 = por %p75, %p76
    %p78 = scmp.ne.s32.totalorder %s64, %s65
    %p79 = scmp.eq.s32.totalorder %s15, 3
    %p80 = por %p78, %p79
    %p82 = scmp.ne.s32.totalorder %s65, %s81
    %p83 = scmp.eq.s32.totalorder %s15, 0
    %p84 = por %p82, %p83
    %s85 = ssub.s32 %s9, %s16
    %p86 = scmp.eq.s32.totalorder %s85, 0
    %s88 = sadd.s32 %s87, 1
    %s89 = scalar_select %p86, %s87, %s88
    %p92 = pneg %p86
    %p93 = scmp.eq.s32.totalorder %s9, 3
    %p94 = por %p92, %p93
    %p95 = scmp.ne.s32.totalorder %s87, %s90
    %p96 = scmp.eq.s32.totalorder %s9, 0
    %p97 = por %p95, %p96
    %p98 = scmp.ne.s32.totalorder %s87, %s90
    %p99 = scmp.eq.s32.totalorder %s14, 3
    %p100 = por %p98, %p99
    %p101 = scmp.ne.s32.totalorder %s90, %s91
    %p102 = scmp.eq.s32.totalorder %s14, 0
    %p103 = por %p101, %p102
    %p104 = scmp.ne.s32.totalorder %s90, %s91
    %p105 = scmp.eq.s32.totalorder %s15, 3
    %p106 = por %p104, %p105
    %p108 = scmp.ne.s32.totalorder %s91, %s107
    %p109 = scmp.eq.s32.totalorder %s15, 0
    %p110 = por %p108, %p109
    %p111 = scmp.le.s32.totalorder 1, %s9
    %p112 = scmp.lt.s32.totalorder %s9, 5
    %p113 = pnand %p111, %p112
    %p114 = pneg %p113
    // Predicated region
    $region9: #{basic_conv2d_311.3} parent=5 // pred_check
      _
    $region10: #{basic_conv2d_311.3} parent=5 // pred_check_branch
      %116 = sbr.rel (%p113) target = $region12
    $region11: #{basic_conv2d_311.3} parent=5 // pred_region
      %s117 = ssub.s32 %s9, 1
      // Predicated region
      $region13: #{basic_conv2d_311.3} parent=11 // pred_check
        %p118 = pneg %p30
      $region14: #{basic_conv2d_311.3} parent=11 // pred_check_branch
        %120 = sbr.rel (%p118) target = $region16
      $region15: #{basic_conv2d_311.3} parent=11 // pred_region
        _
      $region16: #{basic_conv2d_311.3} parent=11 // pred_fallthru
        _
      // Predicated region
      $region17: #{basic_conv2d_311.3} parent=11 // pred_check
        %p121 = pneg %p51
      $region18: #{basic_conv2d_311.3} parent=11 // pred_check_branch
        %123 = sbr.rel (%p121) target = $region20
      $region19: #{basic_conv2d_311.3} parent=11 // pred_region
        _
      $region20: #{basic_conv2d_311.3} parent=11 // pred_fallthru
        _
    $region12: #{basic_conv2d_311.3} parent=5 // pred_fallthru
      _
    %p124 = scmp.lt.s32.totalorder %s9, 4
    // Predicated region
    $region21: #{basic_conv2d_311.3} parent=5 // pred_check
      %p125 = pneg %p124
    $region22: #{basic_conv2d_311.3} parent=5 // pred_check_branch
      %127 = sbr.rel (%p125) target = $region24
    $region23: #{basic_conv2d_311.3} parent=5 // pred_region
      // Predicated region
      $region25: #{basic_conv2d_311.3} parent=23 // pred_check
        %p128 = pneg %p71
      $region26: #{basic_conv2d_311.3} parent=23 // pred_check_branch
        %130 = sbr.rel (%p128) target = $region28
      $region27: #{basic_conv2d_311.3} parent=23 // pred_region
        %p131 = scmp.lt.s32.totalorder %s9, 3
        %s132 = scalar_select %p131, %s9, 3
        %s133 = smul.addr %s132, 8
        %s134 = scalar_lea.vmem %s2, %s133
      $region28: #{basic_conv2d_311.3} parent=23 // pred_fallthru
        _
    $region24: #{basic_conv2d_311.3} parent=5 // pred_fallthru
      _
    %p135 = scmp.le.s32.totalorder 1, %s9
    %p136 = scmp.lt.s32.totalorder %s9, 5
    %p137 = pnand %p135, %p136
    %p138 = pneg %p137
    // Predicated region
    $region29: #{basic_conv2d_311.3} parent=5 // pred_check
      _
    $region30: #{basic_conv2d_311.3} parent=5 // pred_check_branch
      %140 = sbr.rel (%p137) target = $region32
    $region31: #{basic_conv2d_311.3} parent=5 // pred_region
      %s141 = ssub.s32 %s9, 1
      %p142 = pneg %p30
      %p143 = pneg %p27
      %p144 = pneg %p51
      %p145 = pneg %p48
      %p146 = scmp.lt.s32.totalorder %s14, 3
      %s147 = scalar_select %p146, %s14, 3
      %s148 = smul.addr %s147, 8
      %s149 = scalar_lea.vmem %s2, %s148
      %p150 = pneg %p77
      %p151 = pneg %p74
      %p152 = pneg %p103
      %p153 = pneg %p100
      %p154 = scmp.lt.s32.totalorder %s14, 3
      %s155 = scalar_select %p154, %s14, 3
      %s156 = smul.addr %s155, 8
      %s157 = scalar_lea.vmem %s3, %s156
      %p158 = scmp.lt.s32.totalorder %s14, 3
      %s159 = scalar_select %p158, %s14, 3
      %s160 = smul.addr %s159, 8
      %s161 = scalar_lea.vmem %s2, %s160
      %p162 = scmp.lt.s32.totalorder %s14, 3
      %s163 = scalar_select %p162, %s14, 3
      %s164 = smul.addr %s163, 8
      %s165 = scalar_lea.vmem %s3, %s164
      %v166 = vld [vmem:[%s161] sm:$0xff]
      %v167 = vld [vmem:[%s0] sm:$0xff]
      %169 = vset.pattern.permute.xlu0 0
      %170 = vperm.xlu0 %169, %v167
      %v171 = vpop.permute.xlu0 %170
      %v173 = vmul.f32 %v166, %v171
      %v174 = vld [vmem:[%s1] sm:$0xff]
      %176 = vset.pattern.permute.xlu0 0
      %177 = vperm.xlu0 %176, %v174
      %v178 = vpop.permute.xlu0 %177
      %v180 = vadd.f32 %v173, %v178
      %v181 = vmax.f32 %v180, 0.0
      %182 = vst [vmem:[%s165] sm:$0xff] %v181
      %p183 = scmp.lt.s32.totalorder %s14, 3
      %s184 = scalar_select %p183, %s14, 3
      %s185 = smul.addr %s184, 8
      %s186 = scalar_lea.vmem %s3, %s185
      // Predicated region
      $region33: #{basic_conv2d_311.3} parent=31 // pred_check
        %p187 = pneg %p100
      $region34: #{basic_conv2d_311.3} parent=31 // pred_check_branch
        %189 = sbr.rel (%p187) target = $region36
      $region35: #{basic_conv2d_311.3} parent=31 // pred_region
        _
      $region36: #{basic_conv2d_311.3} parent=31 // pred_fallthru
        _
    $region32: #{basic_conv2d_311.3} parent=5 // pred_fallthru
      _
    %p190 = scmp.le.s32.totalorder 2, %s9
    // Predicated region
    $region37: #{basic_conv2d_311.3} parent=5 // pred_check
      %p191 = pneg %p190
    $region38: #{basic_conv2d_311.3} parent=5 // pred_check_branch
      %193 = sbr.rel (%p191) target = $region40
    $region39: #{basic_conv2d_311.3} parent=5 // pred_region
      %s194 = ssub.s32 %s9, 2
      // Predicated region
      $region41: #{basic_conv2d_311.3} parent=39 // pred_check
        %p195 = pneg %p106
      $region42: #{basic_conv2d_311.3} parent=39 // pred_check_branch
        %197 = sbr.rel (%p195) target = $region44
      $region43: #{basic_conv2d_311.3} parent=39 // pred_region
        %p198 = scmp.lt.s32.totalorder %s15, 3
        %s199 = scalar_select %p198, %s15, 3
        %s200 = smul.addr %s199, 8
        %s201 = scalar_lea.vmem %s3, %s200
      $region44: #{basic_conv2d_311.3} parent=39 // pred_fallthru
        _
    $region40: #{basic_conv2d_311.3} parent=5 // pred_fallthru
      _
  $region6: #{basic_conv2d_311.3} parent=0 // loop_footer
    %s13 = sadd.s32 1, %s9
  $region7: #{basic_conv2d_311.3} parent=0 // loop_footer_branch
    %8 = sbr.rel target = $region3
  $region8: #{basic_conv2d_311.3} parent=0 // loop_exit
    _

</llo_original>
